<compile_context>
chip_gen: v5e
topology: v5e:2x2
jax: 0.10.0
libtpu: 0.0.40
codegen_flags: <defaults>
</compile_context>

<pallas_src>
import jax
import jax.numpy as jnp
from jax import lax
from jax.experimental import pallas as pl
from jax.experimental.pallas import tpu as pltpu


def _mcvarnet_kernel(x1_ref, x2_ref, m_ref, w1a_ref, w1b_ref, b1_ref,
                     w2_ref, b2_ref, w3_ref, b3_ref, t2_ref,
                     pred_ref, part_ref):
    # Blocks: x1/t2 are (1, C, TILE) f32, x2 is (1, C, TILE) bf16, mask (1, 1, TILE) f32,
    # weights (hidden,C)/(C,hidden) bf16, biases (.,1) f32. Lanes = flattened spatial.
    x1_f32 = x1_ref[0]                                   # (C, TILE) f32  t1_hr (also y1 target)
    x1 = x1_f32.astype(jnp.bfloat16)                     # bf16 matmul operand
    x2 = x2_ref[0] * m_ref[0].astype(jnp.bfloat16)       # (C, TILE) masked upsampled t2_lr

    # hidden = relu(W1a @ x1 + W1b @ x2 + b1)   -- f32 MXU accumulation
    h = jnp.dot(w1a_ref[...], x1, preferred_element_type=jnp.float32)
    h = h + jnp.dot(w1b_ref[...], x2, preferred_element_type=jnp.float32)
    h = jnp.maximum(h + b1_ref[...], 0.0)
    hb = h.astype(jnp.bfloat16)

    # two reconstruction heads (f32 results)
    y2 = jnp.dot(w2_ref[...], hb, preferred_element_type=jnp.float32) + b2_ref[...]
    y1 = jnp.dot(w3_ref[...], hb, preferred_element_type=jnp.float32) + b3_ref[...]

    # lane-dense f32 prediction store
    pred_ref[...] = y2.astype(pred_ref.dtype).reshape(pred_ref.shape)

    # per-block L1 partial sums in f32 against f32 targets (y1 target == x1)
    s2 = jnp.sum(jnp.abs(y2 - t2_ref[0]))
    s1 = jnp.sum(jnp.abs(y1 - x1_f32))
    r = lax.broadcasted_iota(jnp.int32, (8, 128), 0)
    c = lax.broadcasted_iota(jnp.int32, (8, 128), 1)
    tile = (jnp.where((r == 0) & (c == 0), s2, 0.0)
            + jnp.where((r == 1) & (c == 0), s1, 0.0))
    part_ref[...] = tile.reshape(part_ref.shape)


def make_params(in_ch, hidden, out_ch, key):
    k1, k2, k3, k4, k5, k6, k7 = jax.random.split(key, 7)
    return {
        "w1a": jax.random.normal(k1, (hidden, in_ch), jnp.float32) * 0.2,
        "w1b": jax.random.normal(k2, (hidden, in_ch), jnp.float32) * 0.2,
        "b1": 0.05 * jax.random.normal(k3, (hidden, 1), jnp.float32),
        "w2": jax.random.normal(k4, (out_ch, hidden), jnp.float32) * 0.2,
        "b2": 0.05 * jax.random.normal(k5, (out_ch, 1), jnp.float32),
        "w3": jax.random.normal(k6, (out_ch, hidden), jnp.float32) * 0.2,
        "b3": 0.05 * jax.random.normal(k7, (out_ch, 1), jnp.float32),
    }


def _pick_tile(hw, cap=8192):
    # largest multiple of 128 (<= cap) dividing HW; blocks stay far below the
    # v7x 32 MiB scoped / 64 MiB physical VMEM even double-buffered.
    t = min(hw, cap)
    while hw % t != 0:
        t -= 128
    return max(t, 128)


def mcvarnet_model_wrapper_forward(params, batch_data, return_preds=False):
    t1_hr = batch_data["t1_hr"]            # (B, C, H, W)  NCHW f32
    t2_hr = batch_data["t2_hr"]            # (B, C, H, W)  f32
    t2_lr = batch_data["t2_lr"]            # (B, C, H//2, W//2) f32
    mask = batch_data["mask"]              # (B, 1, H, W)  sampling mask f32

    B, C, H, W = t1_hr.shape
    HW = H * W
    hidden = params["w1a"].shape[0]
    assert HW % 128 == 0, "H*W must be a multiple of 128 for lane-dense tiling"
    TILE = _pick_tile(HW)
    n_s = HW // TILE

    bf = jnp.bfloat16
    # glue (plain JAX): nearest-neighbor 2x upsample fused with its bf16 cast — the only
    # remaining wrapper-side full-resolution pass.
    # TODO(synk): fully fusing the 2x upsample into the kernel (low-res x2 blocks + lane
    # interleave) would cut this stream further, but the lane-space interleave has no
    # robust Mosaic lowering, so it stays as wrapper glue.
    up = jnp.repeat(jnp.repeat(t2_lr, 2, axis=2), 2, axis=3).astype(bf)

    # metadata-only reshapes (row-major); all f32 streams go straight into the kernel
    x1 = t1_hr.reshape(B, C, HW)           # f32 (input + y1 L1 target, deduplicated)
    x2 = up.reshape(B, C, HW)              # bf16
    m = mask.reshape(B, 1, HW)             # f32
    t2 = t2_hr.reshape(B, C, HW)           # f32 (y2 L1 target)

    w1a = params["w1a"].astype(bf)
    w1b = params["w1b"].astype(bf)
    w2 = params["w2"].astype(bf)
    w3 = params["w3"].astype(bf)
    b1, b2, b3 = params["b1"], params["b2"], params["b3"]

    flops = int(8 * B * HW * C * hidden)
    bytes_accessed = int(
        B * C * HW * 4                      # x1 (f32)
        + B * C * HW * 2                    # x2 (bf16)
        + B * HW * 4                        # mask (f32)
        + B * C * HW * 4                    # t2 target (f32)
        + (w1a.size + w1b.size + w2.size + w3.size) * 2
        + (b1.size + b2.size + b3.size) * 4
        + B * C * HW * 4                    # pred (f32)
        + B * n_s * 8 * 128 * 4)            # loss partials (f32)

    pred, partials = pl.pallas_call(
        _mcvarnet_kernel,
        out_shape=(
            jax.ShapeDtypeStruct((B, C, HW), jnp.float32),        # t2_sp (flattened NCHW)
            jax.ShapeDtypeStruct((B, n_s, 8, 128), jnp.float32),  # per-block L1 partials
        ),
        grid_spec=pltpu.PrefetchScalarGridSpec(
            num_scalar_prefetch=0,
            grid=(B, n_s),
            in_specs=[
                pl.BlockSpec((1, C, TILE), lambda b, s: (b, 0, s)),    # x1 = t1_hr (f32)
                pl.BlockSpec((1, C, TILE), lambda b, s: (b, 0, s)),    # x2 = up(t2_lr) (bf16)
                pl.BlockSpec((1, 1, TILE), lambda b, s: (b, 0, s)),    # mask (f32)
                pl.BlockSpec((hidden, C), lambda b, s: (0, 0)),        # W1a
                pl.BlockSpec((hidden, C), lambda b, s: (0, 0)),        # W1b
                pl.BlockSpec((hidden, 1), lambda b, s: (0, 0)),        # b1
                pl.BlockSpec((C, hidden), lambda b, s: (0, 0)),        # W2
                pl.BlockSpec((C, 1), lambda b, s: (0, 0)),             # b2
                pl.BlockSpec((C, hidden), lambda b, s: (0, 0)),        # W3
                pl.BlockSpec((C, 1), lambda b, s: (0, 0)),             # b3
                pl.BlockSpec((1, C, TILE), lambda b, s: (b, 0, s)),    # t2_hr target (f32)
            ],
            out_specs=[
                pl.BlockSpec((1, C, TILE), lambda b, s: (b, 0, s)),        # t2_sp (f32)
                pl.BlockSpec((1, 1, 8, 128), lambda b, s: (b, s, 0, 0)),   # partials
            ],
        ),
        compiler_params=pltpu.CompilerParams(
            dimension_semantics=("parallel", "parallel")),   # no cross-program state
        cost_estimate=pl.CostEstimate(
            flops=flops, transcendentals=0, bytes_accessed=bytes_accessed),
    )(x1, x2, m, w1a, w1b, b1, w2, b2, w3, b3, t2)

    if return_preds:
        t2_sp = pred.reshape(B, C, H, W)   # f32, already NCHW; no transpose needed
        return t2_sp, t2_hr

    loss = (jnp.sum(partials[:, :, 0, 0]) / float(t2_hr.size)
            + 0.1 * jnp.sum(partials[:, :, 1, 0]) / float(t1_hr.size))
    return loss


def _reference(params, batch_data):
    # pure-JAX reference of the same synthetic model + weighted L1 loss
    # (mirrors the kernel's bf16 matmul operands / f32 accumulation / f32 targets)
    t1_hr = batch_data["t1_hr"]
    t2_hr = batch_data["t2_hr"]
    t2_lr = batch_data["t2_lr"]
    mask = batch_data["mask"]
    B, C, H, W = t1_hr.shape
    bf = jnp.bfloat16

    up = jnp.repeat(jnp.repeat(t2_lr, 2, axis=2), 2, axis=3).astype(bf)
    x1 = t1_hr.reshape(B, C, H * W).astype(bf)
    x2 = up.reshape(B, C, H * W) * mask.reshape(B, 1, H * W).astype(bf)

    w1a = params["w1a"].astype(bf)
    w1b = params["w1b"].astype(bf)
    w2 = params["w2"].astype(bf)
    w3 = params["w3"].astype(bf)

    h = (jnp.einsum("hc,bcs->bhs", w1a, x1, preferred_element_type=jnp.float32)
         + jnp.einsum("hc,bcs->bhs", w1b, x2, preferred_element_type=jnp.float32)
         + params["b1"][None])
    h = jnp.maximum(h, 0.0).astype(bf)
    y2 = jnp.einsum("oh,bhs->bos", w2, h, preferred_element_type=jnp.float32) + params["b2"][None]
    y1 = jnp.einsum("oh,bhs->bos", w3, h, preferred_element_type=jnp.float32) + params["b3"][None]

    t2 = t2_hr.reshape(B, C, H * W)        # f32 targets (matches PyTorch L1Loss)
    t1 = t1_hr.reshape(B, C, H * W)
    loss = jnp.mean(jnp.abs(y2 - t2)) + 0.1 * jnp.mean(jnp.abs(y1 - t1))
    t2_sp = y2.reshape(B, C, H, W)
    return loss, t2_sp


if __name__ == "__main__":
    B, C, H, W = 2, 4, 16, 16
    hidden = 32

    key = jax.random.PRNGKey(0)
    k1, k2, k3, k4 = jax.random.split(key, 4)
    batch_data = {
        "t1_hr": jax.random.normal(k1, (B, C, H, W), jnp.float32),
        "t2_hr": jax.random.normal(k2, (B, C, H, W), jnp.float32),
        "t2_lr": jax.random.normal(k3, (B, C, H // 2, W // 2), jnp.float32),
        "mask": jax.random.bernoulli(k4, 0.5, (B, 1, H, W)).astype(jnp.float32),
    }
    params = make_params(C, hidden, C, jax.random.PRNGKey(1))

    loss = mcvarnet_model_wrapper_forward(params, batch_data)
    jax.block_until_ready(loss)

    ref_loss, ref_pred = _reference(params, batch_data)
    assert jnp.allclose(loss, ref_loss, rtol=1e-2, atol=1e-2), (loss, ref_loss)

    # return_preds path: (t2_sp, t2_hr), both f32
    preds, target = mcvarnet_model_wrapper_forward(params, batch_data, return_preds=True)
    jax.block_until_ready(preds)
    assert preds.shape == target.shape == (B, C, H, W)
    assert preds.dtype == jnp.float32
    assert jnp.allclose(preds, ref_pred, rtol=3e-2, atol=3e-2)

    print("KERNEL_OK")
</pallas_src>

<mosaic_0001>
module attributes {stable_mosaic.version = 11 : i64} {
  func.func @_mcvarnet_kernel(%arg0: i32, %arg1: i32, %arg2: memref<1x4x256xf32, #tpu.memory_space<vmem>>, %arg3: memref<1x4x256xbf16, #tpu.memory_space<vmem>>, %arg4: memref<1x1x256xf32, #tpu.memory_space<vmem>>, %arg5: memref<32x4xbf16, #tpu.memory_space<vmem>>, %arg6: memref<32x4xbf16, #tpu.memory_space<vmem>>, %arg7: memref<32x1xf32, #tpu.memory_space<vmem>>, %arg8: memref<4x32xbf16, #tpu.memory_space<vmem>>, %arg9: memref<4x1xf32, #tpu.memory_space<vmem>>, %arg10: memref<4x32xbf16, #tpu.memory_space<vmem>>, %arg11: memref<4x1xf32, #tpu.memory_space<vmem>>, %arg12: memref<1x4x256xf32, #tpu.memory_space<vmem>>, %arg13: memref<1x4x256xf32, #tpu.memory_space<vmem>>, %arg14: memref<1x1x8x128xf32, #tpu.memory_space<vmem>>) attributes {dimension_semantics = [#tpu.dimension_semantics<parallel>, #tpu.dimension_semantics<parallel>], iteration_bounds = array<i64: 2, 1>, scalar_prefetch = 0 : i64, scratch_operands = 0 : i64, tpu.core_type = #tpu.core_type<tc>, window_params = [{transform_indices = @transform_0, window_bounds = array<i64: 1, 4, 256>}, {transform_indices = @transform_1, window_bounds = array<i64: 1, 4, 256>}, {transform_indices = @transform_2, window_bounds = array<i64: 1, 1, 256>}, {pipeline_mode = #tpu.pipeline_mode<synchronous>, transform_indices = @transform_3, window_bounds = array<i64: 32, 4>}, {pipeline_mode = #tpu.pipeline_mode<synchronous>, transform_indices = @transform_4, window_bounds = array<i64: 32, 4>}, {pipeline_mode = #tpu.pipeline_mode<synchronous>, transform_indices = @transform_5, window_bounds = array<i64: 32, 1>}, {pipeline_mode = #tpu.pipeline_mode<synchronous>, transform_indices = @transform_6, window_bounds = array<i64: 4, 32>}, {pipeline_mode = #tpu.pipeline_mode<synchronous>, transform_indices = @transform_7, window_bounds = array<i64: 4, 1>}, {pipeline_mode = #tpu.pipeline_mode<synchronous>, transform_indices = @transform_8, window_bounds = array<i64: 4, 32>}, {pipeline_mode = #tpu.pipeline_mode<synchronous>, transform_indices = @transform_9, window_bounds = array<i64: 4, 1>}, {transform_indices = @transform_10, window_bounds = array<i64: 1, 4, 256>}, {transform_indices = @transform_11, window_bounds = array<i64: 1, 4, 256>}, {transform_indices = @transform_12, window_bounds = array<i64: 1, 1, 8, 128>}]} {
    %c0 = arith.constant 0 : index
    %c0_0 = arith.constant 0 : index
    %c0_1 = arith.constant 0 : index
    %0 = vector.load %arg2[%c0, %c0_0, %c0_1] : memref<1x4x256xf32, #tpu.memory_space<vmem>>, vector<1x4x256xf32>
    %1 = vector.shape_cast %0 : vector<1x4x256xf32> to vector<4x256xf32>
    %2 = arith.truncf %1 : vector<4x256xf32> to vector<4x256xbf16>
    %c0_2 = arith.constant 0 : index
    %c0_3 = arith.constant 0 : index
    %c0_4 = arith.constant 0 : index
    %3 = vector.load %arg3[%c0_2, %c0_3, %c0_4] : memref<1x4x256xbf16, #tpu.memory_space<vmem>>, vector<1x4x256xbf16>
    %4 = vector.shape_cast %3 : vector<1x4x256xbf16> to vector<4x256xbf16>
    %c0_5 = arith.constant 0 : index
    %c0_6 = arith.constant 0 : index
    %c0_7 = arith.constant 0 : index
    %5 = vector.load %arg4[%c0_5, %c0_6, %c0_7] : memref<1x1x256xf32, #tpu.memory_space<vmem>>, vector<1x1x256xf32>
    %6 = vector.shape_cast %5 : vector<1x1x256xf32> to vector<1x256xf32>
    %7 = arith.truncf %6 : vector<1x256xf32> to vector<1x256xbf16>
    %8 = vector.broadcast %7 : vector<1x256xbf16> to vector<4x256xbf16>
    %9 = arith.mulf %4, %8 : vector<4x256xbf16>
    %c0_8 = arith.constant 0 : index
    %c0_9 = arith.constant 0 : index
    %10 = vector.load %arg5[%c0_8, %c0_9] : memref<32x4xbf16, #tpu.memory_space<vmem>>, vector<32x4xbf16>
    %cst = arith.constant dense<0.000000e+00> : vector<32x256xf32>
    %11 = tpu.matmul %10, %2, %cst {dimension_numbers = #tpu.dot_dimension_numbers<[1], [0], [0], [1], [0, 0, 1, 1], [], []>} : vector<32x4xbf16>, vector<4x256xbf16>, vector<32x256xf32> -> vector<32x256xf32>
    %c0_10 = arith.constant 0 : index
    %c0_11 = arith.constant 0 : index
    %12 = vector.load %arg6[%c0_10, %c0_11] : memref<32x4xbf16, #tpu.memory_space<vmem>>, vector<32x4xbf16>
    %cst_12 = arith.constant dense<0.000000e+00> : vector<32x256xf32>
    %13 = tpu.matmul %12, %9, %cst_12 {dimension_numbers = #tpu.dot_dimension_numbers<[1], [0], [0], [1], [0, 0, 1, 1], [], []>} : vector<32x4xbf16>, vector<4x256xbf16>, vector<32x256xf32> -> vector<32x256xf32>
    %14 = arith.addf %11, %13 : vector<32x256xf32>
    %c0_13 = arith.constant 0 : index
    %c0_14 = arith.constant 0 : index
    %15 = vector.load %arg7[%c0_13, %c0_14] : memref<32x1xf32, #tpu.memory_space<vmem>>, vector<32x1xf32>
    %16 = vector.broadcast %15 : vector<32x1xf32> to vector<32x256xf32>
    %17 = arith.addf %14, %16 : vector<32x256xf32>
    %cst_15 = arith.constant 0.000000e+00 : f32
    %18 = vector.broadcast %cst_15 : f32 to vector<32x256xf32>
    %19 = arith.maximumf %17, %18 : vector<32x256xf32>
    %20 = arith.truncf %19 : vector<32x256xf32> to vector<32x256xbf16>
    %c0_16 = arith.constant 0 : index
    %c0_17 = arith.constant 0 : index
    %21 = vector.load %arg8[%c0_16, %c0_17] : memref<4x32xbf16, #tpu.memory_space<vmem>>, vector<4x32xbf16>
    %cst_18 = arith.constant dense<0.000000e+00> : vector<4x256xf32>
    %22 = tpu.matmul %21, %20, %cst_18 {dimension_numbers = #tpu.dot_dimension_numbers<[1], [0], [0], [1], [0, 0, 1, 1], [], []>} : vector<4x32xbf16>, vector<32x256xbf16>, vector<4x256xf32> -> vector<4x256xf32>
    %c0_19 = arith.constant 0 : index
    %c0_20 = arith.constant 0 : index
    %23 = vector.load %arg9[%c0_19, %c0_20] : memref<4x1xf32, #tpu.memory_space<vmem>>, vector<4x1xf32>
    %24 = vector.broadcast %23 : vector<4x1xf32> to vector<4x256xf32>
    %25 = arith.addf %22, %24 : vector<4x256xf32>
    %c0_21 = arith.constant 0 : index
    %c0_22 = arith.constant 0 : index
    %26 = vector.load %arg10[%c0_21, %c0_22] : memref<4x32xbf16, #tpu.memory_space<vmem>>, vector<4x32xbf16>
    %cst_23 = arith.constant dense<0.000000e+00> : vector<4x256xf32>
    %27 = tpu.matmul %26, %20, %cst_23 {dimension_numbers = #tpu.dot_dimension_numbers<[1], [0], [0], [1], [0, 0, 1, 1], [], []>} : vector<4x32xbf16>, vector<32x256xbf16>, vector<4x256xf32> -> vector<4x256xf32>
    %c0_24 = arith.constant 0 : index
    %c0_25 = arith.constant 0 : index
    %28 = vector.load %arg11[%c0_24, %c0_25] : memref<4x1xf32, #tpu.memory_space<vmem>>, vector<4x1xf32>
    %29 = vector.broadcast %28 : vector<4x1xf32> to vector<4x256xf32>
    %30 = arith.addf %27, %29 : vector<4x256xf32>
    %31 = vector.shape_cast %25 : vector<4x256xf32> to vector<1x4x256xf32>
    %c0_26 = arith.constant 0 : index
    %c0_27 = arith.constant 0 : index
    %c0_28 = arith.constant 0 : index
    %32 = vector.load %arg13[%c0_26, %c0_27, %c0_28] : memref<1x4x256xf32, #tpu.memory_space<vmem>>, vector<1x4x256xf32>
    tpu.vector_store %arg13[%c0_26, %c0_27, %c0_28], %31 {strides = array<i32>} : memref<1x4x256xf32, #tpu.memory_space<vmem>>, vector<1x4x256xf32>,
    %c0_29 = arith.constant 0 : index
    %c0_30 = arith.constant 0 : index
    %c0_31 = arith.constant 0 : index
    %33 = vector.load %arg12[%c0_29, %c0_30, %c0_31] : memref<1x4x256xf32, #tpu.memory_space<vmem>>, vector<1x4x256xf32>
    %34 = vector.shape_cast %33 : vector<1x4x256xf32> to vector<4x256xf32>
    %35 = arith.subf %25, %34 : vector<4x256xf32>
    %36 = math.absf %35 : vector<4x256xf32>
    %37 = vector.shape_cast %36 : vector<4x256xf32> to vector<1x4x256xf32>
    %cst_32 = arith.constant dense<0.000000e+00> : vector<1xf32>
    %38 = vector.multi_reduction <add>, %37, %cst_32 [1, 2] : vector<1x4x256xf32> to vector<1xf32>
    %39 = vector.shape_cast %38 : vector<1xf32> to vector<1x1x1xf32>
    %40 = vector.extract %39[0, 0, 0] : f32 from vector<1x1x1xf32>
    %41 = arith.subf %30, %1 : vector<4x256xf32>
    %42 = math.absf %41 : vector<4x256xf32>
    %43 = vector.shape_cast %42 : vector<4x256xf32> to vector<1x4x256xf32>
    %cst_33 = arith.constant dense<0.000000e+00> : vector<1xf32>
    %44 = vector.multi_reduction <add>, %43, %cst_33 [1, 2] : vector<1x4x256xf32> to vector<1xf32>
    %45 = vector.shape_cast %44 : vector<1xf32> to vector<1x1x1xf32>
    %46 = vector.extract %45[0, 0, 0] : f32 from vector<1x1x1xf32>
    %47 = tpu.iota {dimensions = array<i32: 0>} : vector<8x128xi32>
    %48 = tpu.iota {dimensions = array<i32: 1>} : vector<8x128xi32>
    %c0_i32 = arith.constant 0 : i32
    %49 = vector.broadcast %c0_i32 : i32 to vector<8x128xi32>
    %50 = arith.cmpi eq, %47, %49 : vector<8x128xi32>
    %c0_i32_34 = arith.constant 0 : i32
    %51 = vector.broadcast %c0_i32_34 : i32 to vector<8x128xi32>
    %52 = arith.cmpi eq, %48, %51 : vector<8x128xi32>
    %53 = arith.andi %50, %52 : vector<8x128xi1>
    %cst_35 = arith.constant 0.000000e+00 : f32
    %54 = vector.broadcast %40 : f32 to vector<8x128xf32>
    %55 = vector.broadcast %cst_35 : f32 to vector<8x128xf32>
    %56 = arith.select %53, %54, %55 : vector<8x128xi1>, vector<8x128xf32>
    %c1_i32 = arith.constant 1 : i32
    %57 = vector.broadcast %c1_i32 : i32 to vector<8x128xi32>
    %58 = arith.cmpi eq, %47, %57 : vector<8x128xi32>
    %c0_i32_36 = arith.constant 0 : i32
    %59 = vector.broadcast %c0_i32_36 : i32 to vector<8x128xi32>
    %60 = arith.cmpi eq, %48, %59 : vector<8x128xi32>
    %61 = arith.andi %58, %60 : vector<8x128xi1>
    %cst_37 = arith.constant 0.000000e+00 : f32
    %62 = vector.broadcast %46 : f32 to vector<8x128xf32>
    %63 = vector.broadcast %cst_37 : f32 to vector<8x128xf32>
    %64 = arith.select %61, %62, %63 : vector<8x128xi1>, vector<8x128xf32>
    %65 = arith.addf %56, %64 : vector<8x128xf32>
    %66 = vector.shape_cast %65 : vector<8x128xf32> to vector<1x1x8x128xf32>
    %c0_38 = arith.constant 0 : index
    %c0_39 = arith.constant 0 : index
    %c0_40 = arith.constant 0 : index
    %c0_41 = arith.constant 0 : index
    %67 = vector.load %arg14[%c0_38, %c0_39, %c0_40, %c0_41] : memref<1x1x8x128xf32, #tpu.memory_space<vmem>>, vector<1x1x8x128xf32>
    tpu.vector_store %arg14[%c0_38, %c0_39, %c0_40, %c0_41], %66 {strides = array<i32>} : memref<1x1x8x128xf32, #tpu.memory_space<vmem>>, vector<1x1x8x128xf32>,
    return
  }
  func.func @transform_0(%arg0: i32, %arg1: i32) -> (i32, i32, i32) {
    %c0_i32 = arith.constant 0 : i32
    %c0_i32_0 = arith.constant 0 : i32
    return %arg0, %c0_i32, %arg1 : i32, i32, i32
  }
  func.func @transform_1(%arg0: i32, %arg1: i32) -> (i32, i32, i32) {
    %c0_i32 = arith.constant 0 : i32
    %c0_i32_0 = arith.constant 0 : i32
    return %arg0, %c0_i32, %arg1 : i32, i32, i32
  }
  func.func @transform_2(%arg0: i32, %arg1: i32) -> (i32, i32, i32) {
    %c0_i32 = arith.constant 0 : i32
    %c0_i32_0 = arith.constant 0 : i32
    return %arg0, %c0_i32, %arg1 : i32, i32, i32
  }
  func.func @transform_3(%arg0: i32, %arg1: i32) -> (i32, i32) {
    %c0_i32 = arith.constant 0 : i32
    %c0_i32_0 = arith.constant 0 : i32
    %c0_i32_1 = arith.constant 0 : i32
    return %c0_i32, %c0_i32_0 : i32, i32
  }
  func.func @transform_4(%arg0: i32, %arg1: i32) -> (i32, i32) {
    %c0_i32 = arith.constant 0 : i32
    %c0_i32_0 = arith.constant 0 : i32
    %c0_i32_1 = arith.constant 0 : i32
    return %c0_i32, %c0_i32_0 : i32, i32
  }
  func.func @transform_5(%arg0: i32, %arg1: i32) -> (i32, i32) {
    %c0_i32 = arith.constant 0 : i32
    %c0_i32_0 = arith.constant 0 : i32
    %c0_i32_1 = arith.constant 0 : i32
    return %c0_i32, %c0_i32_0 : i32, i32
  }
  func.func @transform_6(%arg0: i32, %arg1: i32) -> (i32, i32) {
    %c0_i32 = arith.constant 0 : i32
    %c0_i32_0 = arith.constant 0 : i32
    %c0_i32_1 = arith.constant 0 : i32
    return %c0_i32, %c0_i32_0 : i32, i32
  }
  func.func @transform_7(%arg0: i32, %arg1: i32) -> (i32, i32) {
    %c0_i32 = arith.constant 0 : i32
    %c0_i32_0 = arith.constant 0 : i32
    %c0_i32_1 = arith.constant 0 : i32
    return %c0_i32, %c0_i32_0 : i32, i32
  }
  func.func @transform_8(%arg0: i32, %arg1: i32) -> (i32, i32) {
    %c0_i32 = arith.constant 0 : i32
    %c0_i32_0 = arith.constant 0 : i32
    %c0_i32_1 = arith.constant 0 : i32
    return %c0_i32, %c0_i32_0 : i32, i32
  }
  func.func @transform_9(%arg0: i32, %arg1: i32) -> (i32, i32) {
    %c0_i32 = arith.constant 0 : i32
    %c0_i32_0 = arith.constant 0 : i32
    %c0_i32_1 = arith.constant 0 : i32
    return %c0_i32, %c0_i32_0 : i32, i32
  }
  func.func @transform_10(%arg0: i32, %arg1: i32) -> (i32, i32, i32) {
    %c0_i32 = arith.constant 0 : i32
    %c0_i32_0 = arith.constant 0 : i32
    return %arg0, %c0_i32, %arg1 : i32, i32, i32
  }
  func.func @transform_11(%arg0: i32, %arg1: i32) -> (i32, i32, i32) {
    %c0_i32 = arith.constant 0 : i32
    %c0_i32_0 = arith.constant 0 : i32
    return %arg0, %c0_i32, %arg1 : i32, i32, i32
  }
  func.func @transform_12(%arg0: i32, %arg1: i32) -> (i32, i32, i32, i32) {
    %c0_i32 = arith.constant 0 : i32
    %c0_i32_0 = arith.constant 0 : i32
    %c0_i32_1 = arith.constant 0 : i32
    return %arg0, %arg1, %c0_i32, %c0_i32_0 : i32, i32, i32, i32
  }
}

</mosaic_0001>

<llo_original>
// kernel: tpu_custom_call.1
$region0: #{tpu_custom_call.1}
  #allocation0 [shape = 'u32[]', space=smem, size = 0x4, offset = 0x4, fixed_abs, tag = 'smem constant byte address 0x4 - core index']
  #allocation1 [shape = 'u32[72,128]{1,0:T(1,128)}', space=vmem, size = 0x9000, scoped, tag = 'internal scratch']
  %s0 = inlined_call_operand.vmem [shape: f32[2,4,256], index: 0, kind: input, shape index: {}]
  %s1 = inlined_call_operand.vmem [shape: bf16[2,4,256], index: 1, kind: input, shape index: {}]
  %s2 = inlined_call_operand.vmem [shape: f32[2,1,256], index: 2, kind: input, shape index: {}]
  %s3 = inlined_call_operand.vmem [shape: bf16[32,4], index: 3, kind: input, shape index: {}]
  %s4 = inlined_call_operand.vmem [shape: bf16[32,4], index: 4, kind: input, shape index: {}]
  %s5 = inlined_call_operand.vmem [shape: f32[32,1], index: 5, kind: input, shape index: {}]
  %s6 = inlined_call_operand.vmem [shape: bf16[4,32], index: 6, kind: input, shape index: {}]
  %s7 = inlined_call_operand.vmem [shape: f32[4,1], index: 7, kind: input, shape index: {}]
  %s8 = inlined_call_operand.vmem [shape: bf16[4,32], index: 8, kind: input, shape index: {}]
  %s9 = inlined_call_operand.vmem [shape: f32[4,1], index: 9, kind: input, shape index: {}]
  %s10 = inlined_call_operand.vmem [shape: f32[2,4,256], index: 10, kind: input, shape index: {}]
  %s11 = inlined_call_operand.hbm [shape: f32[2,4,256], index: 11, kind: output, shape index: {0}]
  %s12 = inlined_call_operand.hbm [shape: f32[2,1,8,128], index: 12, kind: output, shape index: {1}]
  %13 = xla_tuple %s11, %s12
  %s14 = sld [smem:[#allocation0]]
  $region85: #{tpu_custom_call.1} parent=0
    _
  %s16 = ssub.s32 1, %s14
  %s17 = scalar_select 0, %s16, %s14
  $region1: #{tpu_custom_call.1} parent=0
    #allocation2 [shape = 'u8[8192]{0}', space=vmem, size = 0x2000, scoped, tag = 'output window, operand 0']
    #allocation3 [shape = 's32[2]{0}', space=sflag, size = 0x8, scoped, tag = 'scoped memory for tpu_custom_call.1']
    #allocation4 [shape = 'u8[8192]{0}', space=vmem, size = 0x2000, scoped, tag = 'output window, operand 1']
    #allocation5 [shape = 's32[2]{0}', space=sflag, size = 0x8, scoped, tag = 'scoped memory for tpu_custom_call.1']
    %18 = vsyncpa [#allocation3], 0
    %s19 = scalar_lea.sflag [#allocation3], 1
    %20 = vsyncpa %s19, 0
    %21 = vsyncpa [#allocation5], 0
    %s22 = scalar_lea.sflag [#allocation5], 1
    %23 = vsyncpa %s22, 0
    loop: start=0, step=1, limit=4
    $region2: #{tpu_custom_call.1} parent=1 // loop_pre_header
      _
    $region3: #{tpu_custom_call.1} parent=1 // loop_header
      %s25 = sphi 0, %s29
      %p26 = scmp.ge.s32.totalorder %s25, 4
      %s32 = sphi 0, %s44
      %s33 = sphi 0, %s40
      %s34 = sphi 0, %s32
      %s35 = sphi 0, %s33
      %s36 = sphi 0, %s34
      %s37 = sphi 0, %s35
      %s49 = sphi 0, %s51
      %s52 = sphi 0, %s49
      %s53 = sphi 0, %s52
      %s69 = sphi 0, %s53
      %s77 = sphi 0, %s79
      %s80 = sphi 0, %s77
      %s81 = sphi 0, %s80
      %s97 = sphi 0, %s81
      %s105 = sphi 0, %s107
      %s108 = sphi 0, %s105
      %s109 = sphi 0, %s108
      %s125 = sphi 0, %s109
      %s129 = sphi 0, %s129
      %s131 = sphi 0, %s129
      %s132 = sphi 0, %s131
      %s146 = sphi 0, %s132
      %s150 = sphi 0, %s150
      %s152 = sphi 0, %s150
      %s153 = sphi 0, %s152
      %s167 = sphi 0, %s153
      %s171 = sphi 0, %s171
      %s173 = sphi 0, %s171
      %s174 = sphi 0, %s173
      %s188 = sphi 0, %s174
      %s192 = sphi 0, %s192
      %s194 = sphi 0, %s192
      %s195 = sphi 0, %s194
      %s209 = sphi 0, %s195
      %s213 = sphi 0, %s213
      %s215 = sphi 0, %s213
      %s216 = sphi 0, %s215
      %s230 = sphi 0, %s216
      %s234 = sphi 0, %s234
      %s236 = sphi 0, %s234
      %s237 = sphi 0, %s236
      %s251 = sphi 0, %s237
      %s255 = sphi 0, %s255
      %s257 = sphi 0, %s255
      %s258 = sphi 0, %s257
      %s272 = sphi 0, %s258
      %s280 = sphi 0, %s282
      %s283 = sphi 0, %s280
      %s284 = sphi 0, %s283
      %s300 = sphi 0, %s284
      %s308 = sphi 0, %s310
      %s311 = sphi 0, %s308
      %s312 = sphi 0, %s311
      %s328 = sphi 0, %s312
      %s336 = sphi 0, %s338
      %s339 = sphi 0, %s336
      %s340 = sphi 0, %s339
      %s356 = sphi 0, %s340
    $region4: #{tpu_custom_call.1} parent=1 // loop_header_branch
      %28 = sbr.rel (%p26) target = $region8
    $region5: #{tpu_custom_call.1} parent=1 // loop_body
      %s30 = ssub.s32 %s25, 1
      %s31 = ssub.s32 %s25, 2
      %s38 = sadd.s32 1, %s33
      %p39 = scmp.ge.s32.totalorder %s38, 1
      %s40 = scalar_select %p39, 0, %s38
      %s41 = sadd.s32 1, %s32
      %s42 = scalar_select %p39, %s41, %s32
      %p43 = scmp.ge.s32.totalorder %s42, 2
      %s44 = scalar_select %p43, 0, %s42
      %s45 = ssub.s32 %s32, %s44
      %s46 = ssub.s32 %s33, %s40
      %s47 = sor.u32 %s45, %s46
      %p48 = scmp.eq.s32.totalorder %s47, 0
      %s50 = sadd.s32 %s49, 1
      %s51 = scalar_select %p48, %s49, %s50
      %p54 = pneg %p48
      %p55 = scmp.eq.s32.totalorder %s25, 1
      %p56 = por %p54, %p55
      %p57 = scmp.ne.s32.totalorder %s49, %s52
      %p58 = scmp.eq.s32.totalorder %s25, 0
      %p59 = por %p57, %p58
      %p60 = scmp.ne.s32.totalorder %s49, %s52
      %p61 = scmp.eq.s32.totalorder %s30, 1
      %p62 = por %p60, %p61
      %p63 = scmp.ne.s32.totalorder %s52, %s53
      %p64 = scmp.eq.s32.totalorder %s30, 0
      %p65 = por %p63, %p64
      %p66 = scmp.ne.s32.totalorder %s52, %s53
      %p67 = scmp.eq.s32.totalorder %s31, 1
      %p68 = por %p66, %p67
      %p70 = scmp.ne.s32.totalorder %s53, %s69
      %p71 = scmp.eq.s32.totalorder %s31, 0
      %p72 = por %p70, %p71
      %s73 = ssub.s32 %s32, %s44
      %s74 = ssub.s32 %s33, %s40
      %s75 = sor.u32 %s73, %s74
      %p76 = scmp.eq.s32.totalorder %s75, 0
      %s78 = sadd.s32 %s77, 1
      %s79 = scalar_select %p76, %s77, %s78
      %p82 = pneg %p76
      %p83 = scmp.eq.s32.totalorder %s25, 1
      %p84 = por %p82, %p83
      %p85 = scmp.ne.s32.totalorder %s77, %s80
      %p86 = scmp.eq.s32.totalorder %s25, 0
      %p87 = por %p85, %p86
      %p88 = scmp.ne.s32.totalorder %s77, %s80
      %p89 = scmp.eq.s32.totalorder %s30, 1
      %p90 = por %p88, %p89
      %p91 = scmp.ne.s32.totalorder %s80, %s81
      %p92 = scmp.eq.s32.totalorder %s30, 0
      %p93 = por %p91, %p92
      %p94 = scmp.ne.s32.totalorder %s80, %s81
      %p95 = scmp.eq.s32.totalorder %s31, 1
      %p96 = por %p94, %p95
      %p98 = scmp.ne.s32.totalorder %s81, %s97
      %p99 = scmp.eq.s32.totalorder %s31, 0
      %p100 = por %p98, %p99
      %s101 = ssub.s32 %s32, %s44
      %s102 = ssub.s32 %s33, %s40
      %s103 = sor.u32 %s101, %s102
      %p104 = scmp.eq.s32.totalorder %s103, 0
      %s106 = sadd.s32 %s105, 1
      %s107 = scalar_select %p104, %s105, %s106
      %p110 = pneg %p104
      %p111 = scmp.eq.s32.totalorder %s25, 1
      %p112 = por %p110, %p111
      %p113 = scmp.ne.s32.totalorder %s105, %s108
      %p114 = scmp.eq.s32.totalorder %s25, 0
      %p115 = por %p113, %p114
      %p116 = scmp.ne.s32.totalorder %s105, %s108
      %p117 = scmp.eq.s32.totalorder %s30, 1
      %p118 = por %p116, %p117
      %p119 = scmp.ne.s32.totalorder %s108, %s109
      %p120 = scmp.eq.s32.totalorder %s30, 0
      %p121 = por %p119, %p120
      %p122 = scmp.ne.s32.totalorder %s108, %s109
      %p123 = scmp.eq.s32.totalorder %s31, 1
      %p124 = por %p122, %p123
      %p126 = scmp.ne.s32.totalorder %s109, %s125
      %p127 = scmp.eq.s32.totalorder %s31, 0
      %p128 = por %p126, %p127
      %s130 = sadd.s32 %s129, 1
      %p133 = scmp.eq.s32.totalorder %s25, 1
      %p134 = scmp.ne.s32.totalorder %s129, %s131
      %p135 = scmp.eq.s32.totalorder %s25, 0
      %p136 = por %p134, %p135
      %p137 = scmp.ne.s32.totalorder %s129, %s131
      %p138 = scmp.eq.s32.totalorder %s30, 1
      %p139 = por %p137, %p138
      %p140 = scmp.ne.s32.totalorder %s131, %s132
      %p141 = scmp.eq.s32.totalorder %s30, 0
      %p142 = por %p140, %p141
      %p143 = scmp.ne.s32.totalorder %s131, %s132
      %p144 = scmp.eq.s32.totalorder %s31, 1
      %p145 = por %p143, %p144
      %p147 = scmp.ne.s32.totalorder %s132, %s146
      %p148 = scmp.eq.s32.totalorder %s31, 0
      %p149 = por %p147, %p148
      %s151 = sadd.s32 %s150, 1
      %p154 = scmp.eq.s32.totalorder %s25, 1
      %p155 = scmp.ne.s32.totalorder %s150, %s152
      %p156 = scmp.eq.s32.totalorder %s25, 0
      %p157 = por %p155, %p156
      %p158 = scmp.ne.s32.totalorder %s150, %s152
      %p159 = scmp.eq.s32.totalorder %s30, 1
      %p160 = por %p158, %p159
      %p161 = scmp.ne.s32.totalorder %s152, %s153
      %p162 = scmp.eq.s32.totalorder %s30, 0
      %p163 = por %p161, %p162
      %p164 = scmp.ne.s32.totalorder %s152, %s153
      %p165 = scmp.eq.s32.totalorder %s31, 1
      %p166 = por %p164, %p165
      %p168 = scmp.ne.s32.totalorder %s153, %s167
      %p169 = scmp.eq.s32.totalorder %s31, 0
      %p170 = por %p168, %p169
      %s172 = sadd.s32 %s171, 1
      %p175 = scmp.eq.s32.totalorder %s25, 1
      %p176 = scmp.ne.s32.totalorder %s171, %s173
      %p177 = scmp.eq.s32.totalorder %s25, 0
      %p178 = por %p176, %p177
      %p179 = scmp.ne.s32.totalorder %s171, %s173
      %p180 = scmp.eq.s32.totalorder %s30, 1
      %p181 = por %p179, %p180
      %p182 = scmp.ne.s32.totalorder %s173, %s174
      %p183 = scmp.eq.s32.totalorder %s30, 0
      %p184 = por %p182, %p183
      %p185 = scmp.ne.s32.totalorder %s173, %s174
      %p186 = scmp.eq.s32.totalorder %s31, 1
      %p187 = por %p185, %p186
      %p189 = scmp.ne.s32.totalorder %s174, %s188
      %p190 = scmp.eq.s32.totalorder %s31, 0
      %p191 = por %p189, %p190
      %s193 = sadd.s32 %s192, 1
      %p196 = scmp.eq.s32.totalorder %s25, 1
      %p197 = scmp.ne.s32.totalorder %s192, %s194
      %p198 = scmp.eq.s32.totalorder %s25, 0
      %p199 = por %p197, %p198
      %p200 = scmp.ne.s32.totalorder %s192, %s194
      %p201 = scmp.eq.s32.totalorder %s30, 1
      %p202 = por %p200, %p201
      %p203 = scmp.ne.s32.totalorder %s194, %s195
      %p204 = scmp.eq.s32.totalorder %s30, 0
      %p205 = por %p203, %p204
      %p206 = scmp.ne.s32.totalorder %s194, %s195
      %p207 = scmp.eq.s32.totalorder %s31, 1
      %p208 = por %p206, %p207
      %p210 = scmp.ne.s32.totalorder %s195, %s209
      %p211 = scmp.eq.s32.totalorder %s31, 0
      %p212 = por %p210, %p211
      %s214 = sadd.s32 %s213, 1
      %p217 = scmp.eq.s32.totalorder %s25, 1
      %p218 = scmp.ne.s32.totalorder %s213, %s215
      %p219 = scmp.eq.s32.totalorder %s25, 0
      %p220 = por %p218, %p219
      %p221 = scmp.ne.s32.totalorder %s213, %s215
      %p222 = scmp.eq.s32.totalorder %s30, 1
      %p223 = por %p221, %p222
      %p224 = scmp.ne.s32.totalorder %s215, %s216
      %p225 = scmp.eq.s32.totalorder %s30, 0
      %p226 = por %p224, %p225
      %p227 = scmp.ne.s32.totalorder %s215, %s216
      %p228 = scmp.eq.s32.totalorder %s31, 1
      %p229 = por %p227, %p228
      %p231 = scmp.ne.s32.totalorder %s216, %s230
      %p232 = scmp.eq.s32.totalorder %s31, 0
      %p233 = por %p231, %p232
      %s235 = sadd.s32 %s234, 1
      %p238 = scmp.eq.s32.totalorder %s25, 1
      %p239 = scmp.ne.s32.totalorder %s234, %s236
      %p240 = scmp.eq.s32.totalorder %s25, 0
      %p241 = por %p239, %p240
      %p242 = scmp.ne.s32.totalorder %s234, %s236
      %p243 = scmp.eq.s32.totalorder %s30, 1
      %p244 = por %p242, %p243
      %p245 = scmp.ne.s32.totalorder %s236, %s237
      %p246 = scmp.eq.s32.totalorder %s30, 0
      %p247 = por %p245, %p246
      %p248 = scmp.ne.s32.totalorder %s236, %s237
      %p249 = scmp.eq.s32.totalorder %s31, 1
      %p250 = por %p248, %p249
      %p252 = scmp.ne.s32.totalorder %s237, %s251
      %p253 = scmp.eq.s32.totalorder %s31, 0
      %p254 = por %p252, %p253
      %s256 = sadd.s32 %s255, 1
      %p259 = scmp.eq.s32.totalorder %s25, 1
      %p260 = scmp.ne.s32.totalorder %s255, %s257
      %p261 = scmp.eq.s32.totalorder %s25, 0
      %p262 = por %p260, %p261
      %p263 = scmp.ne.s32.totalorder %s255, %s257
      %p264 = scmp.eq.s32.totalorder %s30, 1
      %p265 = por %p263, %p264
      %p266 = scmp.ne.s32.totalorder %s257, %s258
      %p267 = scmp.eq.s32.totalorder %s30, 0
      %p268 = por %p266, %p267
      %p269 = scmp.ne.s32.totalorder %s257, %s258
      %p270 = scmp.eq.s32.totalorder %s31, 1
      %p271 = por %p269, %p270
      %p273 = scmp.ne.s32.totalorder %s258, %s272
      %p274 = scmp.eq.s32.totalorder %s31, 0
      %p275 = por %p273, %p274
      %s276 = ssub.s32 %s32, %s44
      %s277 = ssub.s32 %s33, %s40
      %s278 = sor.u32 %s276, %s277
      %p279 = scmp.eq.s32.totalorder %s278, 0
      %s281 = sadd.s32 %s280, 1
      %s282 = scalar_select %p279, %s280, %s281
      %p285 = pneg %p279
      %p286 = scmp.eq.s32.totalorder %s25, 1
      %p287 = por %p285, %p286
      %p288 = scmp.ne.s32.totalorder %s280, %s283
      %p289 = scmp.eq.s32.totalorder %s25, 0
      %p290 = por %p288, %p289
      %p291 = scmp.ne.s32.totalorder %s280, %s283
      %p292 = scmp.eq.s32.totalorder %s30, 1
      %p293 = por %p291, %p292
      %p294 = scmp.ne.s32.totalorder %s283, %s284
      %p295 = scmp.eq.s32.totalorder %s30, 0
      %p296 = por %p294, %p295
      %p297 = scmp.ne.s32.totalorder %s283, %s284
      %p298 = scmp.eq.s32.totalorder %s31, 1
      %p299 = por %p297, %p298
      %p301 = scmp.ne.s32.totalorder %s284, %s300
      %p302 = scmp.eq.s32.totalorder %s31, 0
      %p303 = por %p301, %p302
      %s304 = ssub.s32 %s32, %s44
      %s305 = ssub.s32 %s33, %s40
      %s306 = sor.u32 %s304, %s305
      %p307 = scmp.eq.s32.totalorder %s306, 0
      %s309 = sadd.s32 %s308, 1
      %s310 = scalar_select %p307, %s308, %s309
      %p313 = pneg %p307
      %p314 = scmp.eq.s32.totalorder %s25, 1
      %p315 = por %p313, %p314
      %p316 = scmp.ne.s32.totalorder %s308, %s311
      %p317 = scmp.eq.s32.totalorder %s25, 0
      %p318 = por %p316, %p317
      %p319 = scmp.ne.s32.totalorder %s308, %s311
      %p320 = scmp.eq.s32.totalorder %s30, 1
      %p321 = por %p319, %p320
      %p322 = scmp.ne.s32.totalorder %s311, %s312
      %p323 = scmp.eq.s32.totalorder %s30, 0
      %p324 = por %p322, %p323
      %p325 = scmp.ne.s32.totalorder %s311, %s312
      %p326 = scmp.eq.s32.totalorder %s31, 1
      %p327 = por %p325, %p326
      %p329 = scmp.ne.s32.totalorder %s312, %s328
      %p330 = scmp.eq.s32.totalorder %s31, 0
      %p331 = por %p329, %p330
      %s332 = ssub.s32 %s32, %s44
      %s333 = ssub.s32 %s33, %s40
      %s334 = sor.u32 %s332, %s333
      %p335 = scmp.eq.s32.totalorder %s334, 0
      %s337 = sadd.s32 %s336, 1
      %s338 = scalar_select %p335, %s336, %s337
      %p341 = pneg %p335
      %p342 = scmp.eq.s32.totalorder %s25, 1
      %p343 = por %p341, %p342
      %p344 = scmp.ne.s32.totalorder %s336, %s339
      %p345 = scmp.eq.s32.totalorder %s25, 0
      %p346 = por %p344, %p345
      %p347 = scmp.ne.s32.totalorder %s336, %s339
      %p348 = scmp.eq.s32.totalorder %s30, 1
      %p349 = por %p347, %p348
      %p350 = scmp.ne.s32.totalorder %s339, %s340
      %p351 = scmp.eq.s32.totalorder %s30, 0
      %p352 = por %p350, %p351
      %p353 = scmp.ne.s32.totalorder %s339, %s340
      %p354 = scmp.eq.s32.totalorder %s31, 1
      %p355 = por %p353, %p354
      %p357 = scmp.ne.s32.totalorder %s340, %s356
      %p358 = scmp.eq.s32.totalorder %s31, 0
      %p359 = por %p357, %p358
      %p360 = scmp.le.s32.totalorder 1, %s25
      %p361 = scmp.lt.s32.totalorder %s25, 3
      %p362 = pnand %p360, %p361
      %p363 = pneg %p362
      // Predicated region
      $region9: #{tpu_custom_call.1} parent=5 // pred_check
        _
      $region10: #{tpu_custom_call.1} parent=5 // pred_check_branch
        %365 = sbr.rel (%p362) target = $region12
      $region11: #{tpu_custom_call.1} parent=5 // pred_region
        %s366 = ssub.s32 %s25, 1
        // Predicated region
        $region13: #{tpu_custom_call.1} parent=11 // pred_check
          %p367 = pneg %p142
        $region14: #{tpu_custom_call.1} parent=11 // pred_check_branch
          %369 = sbr.rel (%p367) target = $region16
        $region15: #{tpu_custom_call.1} parent=11 // pred_region
          _
        $region16: #{tpu_custom_call.1} parent=11 // pred_fallthru
          _
        // Predicated region
        $region17: #{tpu_custom_call.1} parent=11 // pred_check
          %p370 = pneg %p163
        $region18: #{tpu_custom_call.1} parent=11 // pred_check_branch
          %372 = sbr.rel (%p370) target = $region20
        $region19: #{tpu_custom_call.1} parent=11 // pred_region
          _
        $region20: #{tpu_custom_call.1} parent=11 // pred_fallthru
          _
        // Predicated region
        $region21: #{tpu_custom_call.1} parent=11 // pred_check
          %p373 = pneg %p184
        $region22: #{tpu_custom_call.1} parent=11 // pred_check_branch
          %375 = sbr.rel (%p373) target = $region24
        $region23: #{tpu_custom_call.1} parent=11 // pred_region
          _
        $region24: #{tpu_custom_call.1} parent=11 // pred_fallthru
          _
        // Predicated region
        $region25: #{tpu_custom_call.1} parent=11 // pred_check
          %p376 = pneg %p205
        $region26: #{tpu_custom_call.1} parent=11 // pred_check_branch
          %378 = sbr.rel (%p376) target = $region28
        $region27: #{tpu_custom_call.1} parent=11 // pred_region
          _
        $region28: #{tpu_custom_call.1} parent=11 // pred_fallthru
          _
        // Predicated region
        $region29: #{tpu_custom_call.1} parent=11 // pred_check
          %p379 = pneg %p226
        $region30: #{tpu_custom_call.1} parent=11 // pred_check_branch
          %381 = sbr.rel (%p379) target = $region32
        $region31: #{tpu_custom_call.1} parent=11 // pred_region
          _
        $region32: #{tpu_custom_call.1} parent=11 // pred_fallthru
          _
        // Predicated region
        $region33: #{tpu_custom_call.1} parent=11 // pred_check
          %p382 = pneg %p247
        $region34: #{tpu_custom_call.1} parent=11 // pred_check_branch
          %384 = sbr.rel (%p382) target = $region36
        $region35: #{tpu_custom_call.1} parent=11 // pred_region
          _
        $region36: #{tpu_custom_call.1} parent=11 // pred_fallthru
          _
        // Predicated region
        $region37: #{tpu_custom_call.1} parent=11 // pred_check
          %p385 = pneg %p268
        $region38: #{tpu_custom_call.1} parent=11 // pred_check_branch
          %387 = sbr.rel (%p385) target = $region40
        $region39: #{tpu_custom_call.1} parent=11 // pred_region
          _
        $region40: #{tpu_custom_call.1} parent=11 // pred_fallthru
          _
      $region12: #{tpu_custom_call.1} parent=5 // pred_fallthru
        _
      %p388 = scmp.lt.s32.totalorder %s25, 2
      // Predicated region
      $region41: #{tpu_custom_call.1} parent=5 // pred_check
        %p389 = pneg %p388
      $region42: #{tpu_custom_call.1} parent=5 // pred_check_branch
        %391 = sbr.rel (%p389) target = $region44
      $region43: #{tpu_custom_call.1} parent=5 // pred_region
        // Predicated region
        $region45: #{tpu_custom_call.1} parent=43 // pred_check
          %p392 = pneg %p59
        $region46: #{tpu_custom_call.1} parent=43 // pred_check_branch
          %394 = sbr.rel (%p392) target = $region48
        $region47: #{tpu_custom_call.1} parent=43 // pred_region
          %s395 = smul.u32 2, %s33
          %p396 = scmp.lt.s32.totalorder %s32, 1
          %s397 = scalar_select %p396, %s32, 1
          %p398 = scmp.lt.s32.totalorder %s395, 1
          %s399 = scalar_select %p398, %s395, 1
          %s400 = smul.addr %s397, 2
          %s401 = sadd.s32 %s399, %s400
          %s402 = smul.addr %s401, 4
          %s403 = scalar_lea.vmem %s0, %s402
          %s404 = smul.u32 2, %s33
        $region48: #{tpu_custom_call.1} parent=43 // pred_fallthru
          _
        // Predicated region
        $region49: #{tpu_custom_call.1} parent=43 // pred_check
          %p405 = pneg %p87
        $region50: #{tpu_custom_call.1} parent=43 // pred_check_branch
          %407 = sbr.rel (%p405) target = $region52
        $region51: #{tpu_custom_call.1} parent=43 // pred_region
          %s408 = smul.u32 2, %s33
          %p409 = scmp.lt.s32.totalorder %s32, 1
          %s410 = scalar_select %p409, %s32, 1
          %p411 = scmp.lt.s32.totalorder %s408, 1
          %s412 = scalar_select %p411, %s408, 1
          %s413 = smul.addr %s410, 2
          %s414 = sadd.s32 %s412, %s413
          %s415 = smul.addr %s414, 2
          %s416 = scalar_lea.vmem %s1, %s415
          %s417 = smul.u32 2, %s33
        $region52: #{tpu_custom_call.1} parent=43 // pred_fallthru
          _
        // Predicated region
        $region53: #{tpu_custom_call.1} parent=43 // pred_check
          %p418 = pneg %p115
        $region54: #{tpu_custom_call.1} parent=43 // pred_check_branch
          %420 = sbr.rel (%p418) target = $region56
        $region55: #{tpu_custom_call.1} parent=43 // pred_region
          %s421 = smul.u32 2, %s33
          %p422 = scmp.lt.s32.totalorder %s32, 1
          %s423 = scalar_select %p422, %s32, 1
          %p424 = scmp.lt.s32.totalorder %s421, 1
          %s425 = scalar_select %p424, %s421, 1
          %s426 = smul.addr %s423, 2
          %s427 = sadd.s32 %s425, %s426
          %s428 = scalar_lea.vmem %s2, %s427
          %s429 = smul.u32 2, %s33
        $region56: #{tpu_custom_call.1} parent=43 // pred_fallthru
          _
        // Predicated region
        $region57: #{tpu_custom_call.1} parent=43 // pred_check
          %p430 = pneg %p290
        $region58: #{tpu_custom_call.1} parent=43 // pred_check_branch
          %432 = sbr.rel (%p430) target = $region60
        $region59: #{tpu_custom_call.1} parent=43 // pred_region
          %s433 = smul.u32 2, %s33
          %p434 = scmp.lt.s32.totalorder %s32, 1
          %s435 = scalar_select %p434, %s32, 1
          %p436 = scmp.lt.s32.totalorder %s433, 1
          %s437 = scalar_select %p436, %s433, 1
          %s438 = smul.addr %s435, 2
          %s439 = sadd.s32 %s437, %s438
          %s440 = smul.addr %s439, 4
          %s441 = scalar_lea.vmem %s10, %s440
          %s442 = smul.u32 2, %s33
        $region60: #{tpu_custom_call.1} parent=43 // pred_fallthru
          _
      $region44: #{tpu_custom_call.1} parent=5 // pred_fallthru
        _
      %p443 = scmp.le.s32.totalorder 1, %s25
      %p444 = scmp.lt.s32.totalorder %s25, 3
      %p445 = pnand %p443, %p444
      %p446 = pneg %p445
      // Predicated region
      $region61: #{tpu_custom_call.1} parent=5 // pred_check
        _
      $region62: #{tpu_custom_call.1} parent=5 // pred_check_branch
        %448 = sbr.rel (%p445) target = $region64
      $region63: #{tpu_custom_call.1} parent=5 // pred_region
        %s449 = ssub.s32 %s25, 1
        %s450 = smul.u32 2, %s35
        %p451 = scmp.lt.s32.totalorder %s34, 1
        %s452 = scalar_select %p451, %s34, 1
        %p453 = scmp.lt.s32.totalorder %s450, 1
        %s454 = scalar_select %p453, %s450, 1
        %s455 = smul.addr %s452, 2
        %s456 = sadd.s32 %s454, %s455
        %s457 = smul.addr %s456, 4
        %s458 = scalar_lea.vmem %s0, %s457
        %p459 = pneg %p65
        %p460 = pneg %p62
        %s461 = smul.u32 2, %s35
        %p462 = scmp.lt.s32.totalorder %s34, 1
        %s463 = scalar_select %p462, %s34, 1
        %p464 = scmp.lt.s32.totalorder %s461, 1
        %s465 = scalar_select %p464, %s461, 1
        %s466 = smul.addr %s463, 2
        %s467 = sadd.s32 %s465, %s466
        %s468 = smul.addr %s467, 2
        %s469 = scalar_lea.vmem %s1, %s468
        %p470 = pneg %p93
        %p471 = pneg %p90
        %s472 = smul.u32 2, %s35
        %p473 = scmp.lt.s32.totalorder %s34, 1
        %s474 = scalar_select %p473, %s34, 1
        %p475 = scmp.lt.s32.totalorder %s472, 1
        %s476 = scalar_select %p475, %s472, 1
        %s477 = smul.addr %s474, 2
        %s478 = sadd.s32 %s476, %s477
        %s479 = scalar_lea.vmem %s2, %s478
        %p480 = pneg %p121
        %p481 = pneg %p118
        %p482 = pneg %p142
        %p483 = pneg %p139
        %p484 = pneg %p163
        %p485 = pneg %p160
        %p486 = pneg %p184
        %p487 = pneg %p181
        %p488 = pneg %p205
        %p489 = pneg %p202
        %p490 = pneg %p226
        %p491 = pneg %p223
        %p492 = pneg %p247
        %p493 = pneg %p244
        %p494 = pneg %p268
        %p495 = pneg %p265
        %s496 = smul.u32 2, %s35
        %p497 = scmp.lt.s32.totalorder %s34, 1
        %s498 = scalar_select %p497, %s34, 1
        %p499 = scmp.lt.s32.totalorder %s496, 1
        %s500 = scalar_select %p499, %s496, 1
        %s501 = smul.addr %s498, 2
        %s502 = sadd.s32 %s500, %s501
        %s503 = smul.addr %s502, 4
        %s504 = scalar_lea.vmem %s10, %s503
        %p505 = pneg %p296
        %p506 = pneg %p293
        %p507 = pneg %p324
        %p508 = pneg %p321
        %s509 = sand.u32 %s311, 1
        %s510 = scalar_lea.sflag [#allocation3], %s509
        %s511 = sand.u32 %s311, 1
        %s512 = smul.addr %s511, 8
        %s513 = scalar_lea.vmem [#allocation2], %s512
        %p514 = pneg %p352
        %p515 = pneg %p349
        %s516 = sand.u32 %s339, 1
        %s517 = scalar_lea.sflag [#allocation5], %s516
        %s518 = sand.u32 %s339, 1
        %s519 = smul.addr %s518, 8
        %s520 = scalar_lea.vmem [#allocation4], %s519
        %s521 = smul.u32 2, %s35
        %p522 = scmp.lt.s32.totalorder %s34, 1
        %s523 = scalar_select %p522, %s34, 1
        %p524 = scmp.lt.s32.totalorder %s521, 1
        %s525 = scalar_select %p524, %s521, 1
        %s526 = smul.addr %s523, 2
        %s527 = sadd.s32 %s525, %s526
        %s528 = smul.addr %s527, 4
        %s529 = scalar_lea.vmem %s0, %s528
        %s530 = smul.u32 2, %s35
        %s531 = smul.u32 2, %s35
        %p532 = scmp.lt.s32.totalorder %s34, 1
        %s533 = scalar_select %p532, %s34, 1
        %p534 = scmp.lt.s32.totalorder %s531, 1
        %s535 = scalar_select %p534, %s531, 1
        %s536 = smul.addr %s533, 2
        %s537 = sadd.s32 %s535, %s536
        %s538 = smul.addr %s537, 2
        %s539 = scalar_lea.vmem %s1, %s538
        %s540 = smul.u32 2, %s35
        %s541 = smul.u32 2, %s35
        %p542 = scmp.lt.s32.totalorder %s34, 1
        %s543 = scalar_select %p542, %s34, 1
        %p544 = scmp.lt.s32.totalorder %s541, 1
        %s545 = scalar_select %p544, %s541, 1
        %s546 = smul.addr %s543, 2
        %s547 = sadd.s32 %s545, %s546
        %s548 = scalar_lea.vmem %s2, %s547
        %s549 = smul.u32 2, %s35
        %s550 = smul.u32 2, %s35
        %p551 = scmp.lt.s32.totalorder %s34, 1
        %s552 = scalar_select %p551, %s34, 1
        %p553 = scmp.lt.s32.totalorder %s550, 1
        %s554 = scalar_select %p553, %s550, 1
        %s555 = smul.addr %s552, 2
        %s556 = sadd.s32 %s554, %s555
        %s557 = smul.addr %s556, 4
        %s558 = scalar_lea.vmem %s10, %s557
        %s559 = smul.u32 2, %s35
        %s560 = smul.u32 2, %s35
        %v562 = vld [vmem:[%s529] sm:$0xff]
        %564 = vst [vmem:[#allocation1] ss:$2 sm:$0xff] %v562
        %v565 = vld.sshfl [vmem:[#allocation1] sm:$0xff pattern:$0x75316420]
        %v566 = vld.sshfl [vmem:[#allocation1 + $0x8] sm:$0xff pattern:$0x75316420]
        %v569 = vpack.c.bf16 %v565, %v565
        %v570 = vpack.c.bf16 %v566, %v566
        %v571 = vld [vmem:[%s539] sm:$0xf]
        %v572 = vld [vmem:[%s548] sm:$0x3]
        %v574 = vperm.slane %v572, 0
        %v575 = vperm.slane %v572, 1
        %v578 = vpack.c.bf16 %v575, %v574
        %v580 = vunpack.c.l.b16 %v578
        %v581 = vunpack.c.h.b16 %v578
        %v582 = vpack.c.b16 %v580, %v580
        %v583 = vpack.c.b16 %v581, %v581
        %v585 = vpack.i.b16 %v582, %v582
        %v587 = vperm.slane %v585, 0
        %v589 = vpack.i.b16 %v583, %v583
        %v591 = vperm.slane %v589, 0
        %v592 = vunpack.c.l.bf16 %v571
        %v593 = vunpack.c.l.bf16 %v587
        %v594 = vunpack.c.l.bf16 %v591
        %v597 = vrot.slane %v594, 4
        %vm598 = vcmask 1043456
        %v599 = vsel %vm598, %v593, %v597
        %v601 = vmul.f32 %v592, %v599
        %603 = vst [vmem:[#allocation1] ss:$2 sm:$0xff] %v601
        %v604 = vld.sshfl [vmem:[#allocation1] sm:$0xff pattern:$0x75316420]
        %v605 = vld.sshfl [vmem:[#allocation1 + $0x8] sm:$0xff pattern:$0x75316420]
        %v608 = vpack.c.bf16 %v604, %v604
        %v609 = vpack.c.bf16 %v605, %v605
        %v610 = vld [vmem:[%s3] sm:$0xf]
        %v611 = vld [vmem:[%s3 + $0x4] sm:$0xf]
        %v612 = vld [vmem:[%s3 + $0x8] sm:$0xf]
        %v613 = vld [vmem:[%s3 + $0xc] sm:$0xf]
        %v614 = vld [vmem:[%s4] sm:$0xf]
        %v615 = vld [vmem:[%s4 + $0x4] sm:$0xf]
        %v616 = vld [vmem:[%s4 + $0x8] sm:$0xf]
        %v617 = vld [vmem:[%s4 + $0xc] sm:$0xf]
        %v622 = vunpack.c.l.b16 %v614
        %v623 = vunpack.c.l.b16 %v615
        %v624 = vunpack.c.l.b16 %v616
        %v625 = vunpack.c.l.b16 %v617
        %v626 = vpack.c.b16 %v623, %v622
        %v627 = vpack.c.b16 %v625, %v624
        %vm628 = vcmask 31744
        %v630 = vsel %vm628, %v626, 0
        %v633 = vsel %vm628, %v627, 0
        %vm635 = vcmask 1041408
        %v637 = vsel %vm635, %v608, 0
        %v640 = vsel %vm635, %v609, 0
        %642 = vmatpush.bf16.msra.mxu0 0
        %643 = vmatpush.bf16.msra.mxu0 0
        %644 = vmatpush.bf16.msra.mxu0 0
        %645 = vmatpush.bf16.msra.mxu0 0
        %646 = vmatpush.bf16.msra.mxu0 0
        %647 = vmatpush.bf16.msra.mxu0 0
        %648 = vmatpush.bf16.msra.mxu0 0
        %649 = vmatpush.bf16.msra.mxu0 %v637
        %650 = vmatmul.bf16.gmra.mxu0 %v630
        %v651 = vpop.f32.mrf.mxu0
        %v652 = vadd.f32 0.0, %v651
        %v653 = vpop.f32.mrf.mxu0
        %v654 = vadd.f32 0.0, %v653
        %655 = vmatmul.bf16.gmra.mxu0 %v633
        %v656 = vpop.f32.mrf.mxu0
        %v657 = vadd.f32 0.0, %v656
        %v658 = vpop.f32.mrf.mxu0
        %v659 = vadd.f32 0.0, %v658
        %660 = vdwg.mxu0
        %661 = vmatpush.bf16.msra.mxu0 0
        %662 = vmatpush.bf16.msra.mxu0 0
        %663 = vmatpush.bf16.msra.mxu0 0
        %664 = vmatpush.bf16.msra.mxu0 0
        %665 = vmatpush.bf16.msra.mxu0 0
        %666 = vmatpush.bf16.msra.mxu0 0
        %667 = vmatpush.bf16.msra.mxu0 0
        %668 = vmatpush.bf16.msra.mxu0 %v640
        %669 = vmatmul.bf16.gmra.mxu0 %v630
        %v670 = vpop.f32.mrf.mxu0
        %v671 = vadd.f32 0.0, %v670
        %v672 = vpop.f32.mrf.mxu0
        %v673 = vadd.f32 0.0, %v672
        %674 = vmatmul.bf16.gmra.mxu0 %v633
        %v675 = vpop.f32.mrf.mxu0
        %v676 = vadd.f32 0.0, %v675
        %v677 = vpop.f32.mrf.mxu0
        %v678 = vadd.f32 0.0, %v677
        %679 = vdwg.mxu0
        %v684 = vunpack.c.l.b16 %v610
        %v685 = vunpack.c.l.b16 %v611
        %v686 = vunpack.c.l.b16 %v612
        %v687 = vunpack.c.l.b16 %v613
        %v688 = vpack.c.b16 %v685, %v684
        %v689 = vpack.c.b16 %v687, %v686
        %v691 = vsel %vm628, %v688, 0
        %v694 = vsel %vm628, %v689, 0
        %v697 = vsel %vm635, %v569, 0
        %v700 = vsel %vm635, %v570, 0
        %702 = vmatpush.bf16.msra.mxu0 0
        %703 = vmatpush.bf16.msra.mxu0 0
        %704 = vmatpush.bf16.msra.mxu0 0
        %705 = vmatpush.bf16.msra.mxu0 0
        %706 = vmatpush.bf16.msra.mxu0 0
        %707 = vmatpush.bf16.msra.mxu0 0
        %708 = vmatpush.bf16.msra.mxu0 0
        %709 = vmatpush.bf16.msra.mxu0 %v697
        %710 = vmatmul.bf16.gmra.mxu0 %v691
        %v711 = vpop.f32.mrf.mxu0
        %v712 = vadd.f32 %v652, %v711
        %v713 = vpop.f32.mrf.mxu0
        %v714 = vadd.f32 %v654, %v713
        %715 = vmatmul.bf16.gmra.mxu0 %v694
        %v716 = vpop.f32.mrf.mxu0
        %v717 = vadd.f32 %v657, %v716
        %v718 = vpop.f32.mrf.mxu0
        %v719 = vadd.f32 %v659, %v718
        %720 = vdwg.mxu0
        %721 = vmatpush.bf16.msra.mxu0 0
        %722 = vmatpush.bf16.msra.mxu0 0
        %723 = vmatpush.bf16.msra.mxu0 0
        %724 = vmatpush.bf16.msra.mxu0 0
        %725 = vmatpush.bf16.msra.mxu0 0
        %726 = vmatpush.bf16.msra.mxu0 0
        %727 = vmatpush.bf16.msra.mxu0 0
        %728 = vmatpush.bf16.msra.mxu0 %v700
        %729 = vmatmul.bf16.gmra.mxu0 %v691
        %v730 = vpop.f32.mrf.mxu0
        %v731 = vadd.f32 %v671, %v730
        %v732 = vpop.f32.mrf.mxu0
        %v733 = vadd.f32 %v673, %v732
        %734 = vmatmul.bf16.gmra.mxu0 %v694
        %v735 = vpop.f32.mrf.mxu0
        %v736 = vadd.f32 %v676, %v735
        %v737 = vpop.f32.mrf.mxu0
        %v738 = vadd.f32 %v678, %v737
        %739 = vdwg.mxu0
        %v740 = vld [vmem:[%s5] sm:$0xff]
        %v741 = vld [vmem:[%s5 + $0x8] sm:$0xff]
        %v742 = vld [vmem:[%s5 + $0x10] sm:$0xff]
        %v743 = vld [vmem:[%s5 + $0x18] sm:$0xff]
        %745 = vset.pattern.permute.xlu0 0
        %746 = vperm.xlu0 %745, %v740
        %v747 = vpop.permute.xlu0 %746
        %750 = vset.pattern.permute.xlu0 0
        %751 = vperm.xlu0 %750, %v741
        %v752 = vpop.permute.xlu0 %751
        %755 = vset.pattern.permute.xlu0 0
        %756 = vperm.xlu0 %755, %v742
        %v757 = vpop.permute.xlu0 %756
        %760 = vset.pattern.permute.xlu0 0
        %761 = vperm.xlu0 %760, %v743
        %v762 = vpop.permute.xlu0 %761
        %v764 = vadd.f32 %v712, %v747
        %v765 = vadd.f32 %v731, %v747
        %v766 = vadd.f32 %v714, %v752
        %v767 = vadd.f32 %v733, %v752
        %v768 = vadd.f32 %v717, %v757
        %v769 = vadd.f32 %v736, %v757
        %v770 = vadd.f32 %v719, %v762
        %v771 = vadd.f32 %v738, %v762
        %v772 = vmax.f32 %v764, 0.0
        %v773 = vmax.f32 %v765, 0.0
        %v774 = vmax.f32 %v766, 0.0
        %v775 = vmax.f32 %v767, 0.0
        %v776 = vmax.f32 %v768, 0.0
        %v777 = vmax.f32 %v769, 0.0
        %v778 = vmax.f32 %v770, 0.0
        %v779 = vmax.f32 %v771, 0.0
        %v780 = vpack.c.bf16 %v774, %v772
        %v781 = vpack.c.bf16 %v775, %v773
        %v782 = vpack.c.bf16 %v778, %v776
        %v783 = vpack.c.bf16 %v779, %v777
        %v784 = vld [vmem:[%s6] sm:$0x3]
        %v785 = vld [vmem:[%s7] sm:$0xf]
        %787 = vset.pattern.permute.xlu0 0
        %788 = vperm.xlu0 %787, %v785
        %v789 = vpop.permute.xlu0 %788
        %vm791 = vcmask 261120
        %v793 = vsel %vm791, %v784, 0
        %795 = vmatpush.bf16.msra.mxu0 0
        %796 = vmatpush.bf16.msra.mxu0 0
        %797 = vmatpush.bf16.msra.mxu0 0
        %798 = vmatpush.bf16.msra.mxu0 0
        %799 = vmatpush.bf16.msra.mxu0 0
        %800 = vmatpush.bf16.msra.mxu0 0
        %801 = vmatpush.bf16.msra.mxu0 %v782
        %802 = vmatpush.bf16.msra.mxu0 %v780
        %803 = vmatmul.bf16.gmra.mxu0 %v793
        %v804 = vpop.f32.mrf.mxu0
        %v805 = vadd.f32 %v789, %v804
        %v806 = vpop.f32.mrf.mxu0
        %807 = vdwg.mxu0
        %808 = vmatpush.bf16.msra.mxu0 0
        %809 = vmatpush.bf16.msra.mxu0 0
        %810 = vmatpush.bf16.msra.mxu0 0
        %811 = vmatpush.bf16.msra.mxu0 0
        %812 = vmatpush.bf16.msra.mxu0 0
        %813 = vmatpush.bf16.msra.mxu0 0
        %814 = vmatpush.bf16.msra.mxu0 %v783
        %815 = vmatpush.bf16.msra.mxu0 %v781
        %816 = vmatmul.bf16.gmra.mxu0 %v793
        %v817 = vpop.f32.mrf.mxu0
        %v818 = vadd.f32 %v789, %v817
        %v819 = vpop.f32.mrf.mxu0
        %820 = vdwg.mxu0
        %v821 = vld [vmem:[%s8] sm:$0x3]
        %v822 = vld [vmem:[%s9] sm:$0xf]
        %824 = vset.pattern.permute.xlu0 0
        %825 = vperm.xlu0 %824, %v822
        %v826 = vpop.permute.xlu0 %825
        %v829 = vsel %vm791, %v821, 0
        %831 = vmatpush.bf16.msra.mxu0 0
        %832 = vmatpush.bf16.msra.mxu0 0
        %833 = vmatpush.bf16.msra.mxu0 0
        %834 = vmatpush.bf16.msra.mxu0 0
        %835 = vmatpush.bf16.msra.mxu0 0
        %836 = vmatpush.bf16.msra.mxu0 0
        %837 = vmatpush.bf16.msra.mxu0 %v782
        %838 = vmatpush.bf16.msra.mxu0 %v780
        %839 = vmatmul.bf16.gmra.mxu0 %v829
        %v840 = vpop.f32.mrf.mxu0
        %v841 = vadd.f32 %v826, %v840
        %v842 = vpop.f32.mrf.mxu0
        %843 = vdwg.mxu0
        %844 = vmatpush.bf16.msra.mxu0 0
        %845 = vmatpush.bf16.msra.mxu0 0
        %846 = vmatpush.bf16.msra.mxu0 0
        %847 = vmatpush.bf16.msra.mxu0 0
        %848 = vmatpush.bf16.msra.mxu0 0
        %849 = vmatpush.bf16.msra.mxu0 0
        %850 = vmatpush.bf16.msra.mxu0 %v783
        %851 = vmatpush.bf16.msra.mxu0 %v781
        %852 = vmatmul.bf16.gmra.mxu0 %v829
        %v853 = vpop.f32.mrf.mxu0
        %v854 = vadd.f32 %v826, %v853
        %v855 = vpop.f32.mrf.mxu0
        %856 = vdwg.mxu0
        %v859 = vrot.slane %v818, 4
        %v860 = vsel %vm598, %v805, %v859
        %862 = vst [vmem:[%s513] sm:$0xff] %v860
        %v863 = vld [vmem:[%s558] sm:$0xff]
        %865 = vst [vmem:[#allocation1] ss:$2 sm:$0xff] %v863
        %v866 = vld.sshfl [vmem:[#allocation1] sm:$0xff pattern:$0x75316420]
        %v867 = vld.sshfl [vmem:[#allocation1 + $0x8] sm:$0xff pattern:$0x75316420]
        %v870 = vsub.f32 %v805, %v866
        %v871 = vsub.f32 %v818, %v867
        %v872 = vand.u32 2147483647, %v870
        %v873 = vand.u32 2147483647, %v871
        %v874 = vsel %vm598, %v872, 0.0
        %v875 = vsel %vm598, %v873, 0.0
        %v876 = vadd.f32 %v874, %v875
        %877 = vadd.xlane.f32.xlu0 %v876
        %v878 = vpop.xlane.xlu0 %877
        %v879 = vrot.slane %v878, 4
        %v880 = vadd.f32 %v878, %v879
        %v881 = vrot.slane %v880, 2
        %v882 = vadd.f32 %v880, %v881
        %v883 = vrot.slane %v882, 1
        %v884 = vadd.f32 %v882, %v883
        %s885 = vtos %v884
        %886 = vst [vmem:[#allocation1] ss:$2 sm:$0xff] %v562
        %v887 = vld.sshfl [vmem:[#allocation1] sm:$0xff pattern:$0x75316420]
        %v888 = vld.sshfl [vmem:[#allocation1 + $0x8] sm:$0xff pattern:$0x75316420]
        %v891 = vsub.f32 %v841, %v887
        %v892 = vsub.f32 %v854, %v888
        %v893 = vand.u32 2147483647, %v891
        %v894 = vand.u32 2147483647, %v892
        %v895 = vsel %vm598, %v893, 0.0
        %v896 = vsel %vm598, %v894, 0.0
        %v897 = vadd.f32 %v895, %v896
        %898 = vadd.xlane.f32.xlu0 %v897
        %v899 = vpop.xlane.xlu0 %898
        %v900 = vrot.slane %v899, 4
        %v901 = vadd.f32 %v899, %v900
        %v902 = vrot.slane %v901, 2
        %v903 = vadd.f32 %v901, %v902
        %v904 = vrot.slane %v903, 1
        %v905 = vadd.f32 %v903, %v904
        %s906 = vtos %v905
        %v907 = vlaneseq
        %v908 = vshrl.u32 %v907, 7
        %v909 = vlaneseq
        %v910 = vand.u32 %v909, 127
        %vm911 = vcmp.eq.s32.totalorder %v908, 0
        %vm912 = vcmp.eq.s32.totalorder %v910, 0
        %vm913 = vmand %vm911, %vm912
        %v914 = vstv %s885
        %v915 = vsel %vm913, %v914, 0.0
        %vm916 = vcmp.eq.s32.totalorder %v908, 1
        %vm917 = vmand %vm916, %vm912
        %v918 = vstv %s906
        %v919 = vsel %vm917, %v918, 0.0
        %v920 = vadd.f32 %v915, %v919
        %921 = vst [vmem:[%s520] sm:$0xff] %v920
        %s922 = sand.u32 %s311, 1
        %s923 = scalar_lea.sflag [#allocation3], %s922
        %s924 = sand.u32 %s311, 1
        %s925 = smul.addr %s924, 8
        %s926 = scalar_lea.vmem [#allocation2], %s925
        %s927 = sand.u32 %s339, 1
        %s928 = scalar_lea.sflag [#allocation5], %s927
        %s929 = sand.u32 %s339, 1
        %s930 = smul.addr %s929, 8
        %s931 = scalar_lea.vmem [#allocation4], %s930
        // Predicated region
        $region65: #{tpu_custom_call.1} parent=63 // pred_check
          %p932 = pneg %p321
        $region66: #{tpu_custom_call.1} parent=63 // pred_check_branch
          %934 = sbr.rel (%p932) target = $region68
        $region67: #{tpu_custom_call.1} parent=63 // pred_region
          %s935 = smul.u32 2, %s35
          %937 = vsyncadd %s923, 0
          %s938 = smul.addr %s34, 2
          %s939 = sadd.s32 %s935, %s938
          %s940 = smul.addr %s939, 4
          %s941 = scalar_lea.hbm %s11, %s940
          %s943 = sshll.u32 %s926, 4
          %s944 = int_to_ptr.vmem [resolvable:$true] %s943
          %s945 = sshll.u32 %s941, 4
          %s946 = int_to_ptr.hbm [resolvable:$true] %s945
          %948 = dma.vmem_to_hbm [thread:$0]  %s944, 128, %s946, %s923
        $region68: #{tpu_custom_call.1} parent=63 // pred_fallthru
          _
        // Predicated region
        $region69: #{tpu_custom_call.1} parent=63 // pred_check
          %p949 = pneg %p349
        $region70: #{tpu_custom_call.1} parent=63 // pred_check_branch
          %951 = sbr.rel (%p949) target = $region72
        $region71: #{tpu_custom_call.1} parent=63 // pred_region
          %953 = vsyncadd %s928, 0
          %s954 = sadd.s32 %s35, %s34
          %s955 = smul.addr %s954, 8
          %s956 = scalar_lea.hbm %s12, %s955
          %s958 = sshll.u32 %s931, 4
          %s959 = int_to_ptr.vmem [resolvable:$true] %s958
          %s960 = sshll.u32 %s956, 4
          %s961 = int_to_ptr.hbm [resolvable:$true] %s960
          %963 = dma.vmem_to_hbm [thread:$0]  %s959, 128, %s961, %s928
        $region72: #{tpu_custom_call.1} parent=63 // pred_fallthru
          _
      $region64: #{tpu_custom_call.1} parent=5 // pred_fallthru
        _
      %p964 = scmp.le.s32.totalorder 2, %s25
      // Predicated region
      $region73: #{tpu_custom_call.1} parent=5 // pred_check
        %p965 = pneg %p964
      $region74: #{tpu_custom_call.1} parent=5 // pred_check_branch
        %967 = sbr.rel (%p965) target = $region76
      $region75: #{tpu_custom_call.1} parent=5 // pred_region
        %s968 = ssub.s32 %s25, 2
        // Predicated region
        $region77: #{tpu_custom_call.1} parent=75 // pred_check
          %p969 = pneg %p327
        $region78: #{tpu_custom_call.1} parent=75 // pred_check_branch
          %971 = sbr.rel (%p969) target = $region80
        $region79: #{tpu_custom_call.1} parent=75 // pred_region
          %s972 = sand.u32 %s312, 1
          %s973 = scalar_lea.sflag [#allocation3], %s972
          %s974 = sand.u32 %s312, 1
          %s975 = smul.addr %s974, 8
          %s976 = scalar_lea.vmem [#allocation2], %s975
          %978 = dma.done %s973, 128
        $region80: #{tpu_custom_call.1} parent=75 // pred_fallthru
          _
        // Predicated region
        $region81: #{tpu_custom_call.1} parent=75 // pred_check
          %p979 = pneg %p355
        $region82: #{tpu_custom_call.1} parent=75 // pred_check_branch
          %981 = sbr.rel (%p979) target = $region84
        $region83: #{tpu_custom_call.1} parent=75 // pred_region
          %s982 = sand.u32 %s340, 1
          %s983 = scalar_lea.sflag [#allocation5], %s982
          %s984 = sand.u32 %s340, 1
          %s985 = smul.addr %s984, 8
          %s986 = scalar_lea.vmem [#allocation4], %s985
          %988 = dma.done %s983, 128
        $region84: #{tpu_custom_call.1} parent=75 // pred_fallthru
          _
      $region76: #{tpu_custom_call.1} parent=5 // pred_fallthru
        _
    $region6: #{tpu_custom_call.1} parent=1 // loop_footer
      %s29 = sadd.s32 1, %s25
    $region7: #{tpu_custom_call.1} parent=1 // loop_footer_branch
      %24 = sbr.rel target = $region3
    $region8: #{tpu_custom_call.1} parent=1 // loop_exit
      _
    %989 = vsyncpa [#allocation3], 1
    %s990 = scalar_lea.sflag [#allocation3], 1
    %991 = vsyncpa %s990, 1
    %992 = vsyncpa [#allocation5], 1
    %s993 = scalar_lea.sflag [#allocation5], 1
    %994 = vsyncpa %s993, 1

</llo_original>
